<compile_context>
chip_gen: v7x
topology: tpu7x:2x2x1
jax: 0.10.0
libtpu: 0.0.40
codegen_flags: <defaults>
</compile_context>

<pallas_src>
import jax
import jax.numpy as jnp
from jax.experimental import pallas as pl
from jax.experimental.pallas import tpu as pltpu


def _matmul_kernel(x_ref, w_ref, o_ref, acc_ref):
    # x_ref: (tm, tk), w_ref: (tk, tn), o_ref: (tm, tn), acc_ref: (tm, tn) f32.
    @pl.when(pl.program_id(2) == 0)
    def _zero():
        acc_ref[...] = jnp.zeros_like(acc_ref)

    acc_ref[...] += jnp.dot(
        x_ref[...], w_ref[...], preferred_element_type=jnp.float32
    )

    @pl.when(pl.program_id(2) == pl.num_programs(2) - 1)
    def _store():
        o_ref[...] = acc_ref[...].astype(o_ref.dtype)


def _round_up(x: int, m: int) -> int:
    return ((x + m - 1) // m) * m


def _cdiv(a: int, b: int) -> int:
    return (a + b - 1) // b


def linear(
    x: jax.Array,
    weight: jax.Array,
    *,
    tm: int = 512,
    tn: int | None = None,
    tk: int | None = None,
    compute_dtype=None,
    out_dtype=None,
) -> jax.Array:
    """x: (..., input_dim), weight: (input_dim_padded, output_dim) -> (..., output_dim).

    * compute_dtype: optionally cast MXU operands (jnp.bfloat16 recommended on
      v5e/v6e/v7x); accumulation is always float32.
    * out_dtype: output dtype (default: x.dtype).
    * weight may be pre-padded along K with zero rows (hoists the pad out of
      the hot path); extra rows must be zero.
    """
    *lead, K = x.shape
    Kw, N = weight.shape
    assert Kw >= K, f"weight rows ({Kw}) must be >= input_dim ({K})"

    out_dtype = out_dtype if out_dtype is not None else x.dtype
    x2 = x.reshape(-1, K)
    M = x2.shape[0]

    # Operand cast (skipped per-operand if already in compute_dtype, so a
    # pre-cast weight parameter costs nothing per call).
    if compute_dtype is not None:
        if x2.dtype != compute_dtype:
            x2 = x2.astype(compute_dtype)
        if weight.dtype != compute_dtype:
            weight = weight.astype(compute_dtype)
    cdt = x2.dtype
    is_bf16 = cdt == jnp.bfloat16

    # dtype-aware default tiles (MXU-friendly, lane-dense).
    if tn is None:
        tn = 2048 if is_bf16 else 1024
    if tk is None:
        tk = 1024 if is_bf16 else 512

    # Sublane multiple for the row tile (covers both operand and output dtype).
    sub = 16 if (is_bf16 or out_dtype == jnp.bfloat16) else 8

    # --- K handling: only K genuinely needs zero padding for correctness. ---
    if Kw <= tk:
        tk_e = Kw          # single K step; block spans the full K dim.
        Kp = Kw
    else:
        tk_e = tk          # tk is a multiple of 128 -> valid lane/sublane dim.
        Kp = _round_up(Kw, tk_e)
    if Kp != Kw:
        weight = jnp.pad(weight, ((0, Kp - Kw), (0, 0)))
    if Kp != K:
        x2 = jnp.pad(x2, ((0, 0), (0, Kp - K)))

    # --- M / N: no padding; edge blocks are partial (OOB writes dropped). ---
    tm_e = min(tm, _round_up(M, sub))
    tn_e = min(tn, _round_up(N, 128))

    grid_m = _cdiv(M, tm_e)
    grid_n = _cdiv(N, tn_e)
    grid_k = Kp // tk_e

    # v7x megacore: make sure at least one parallel axis has >= 2 blocks when
    # the problem is big enough to split (no-op cost on 1-TC v5e/v6e).
    if grid_m == 1 and grid_n == 1 and N >= 256:
        tn_e = _round_up(_cdiv(N, 2), 128)
        grid_n = _cdiv(N, tn_e)

    # --- VMEM budget (double-buffered in/out + f32 accumulator). ---
    xb = jnp.dtype(cdt).itemsize
    ob = jnp.dtype(out_dtype).itemsize
    est = (2 * tm_e * tk_e * xb + 2 * tk_e * tn_e * xb
           + 2 * tm_e * tn_e * ob + tm_e * tn_e * 4)
    vmem_limit = None
    if est > (14 << 20):
        # Raise the scoped limit only when needed; cap at 48 MiB so the same
        # config is safe on v7x (64 MiB physical) as well as v5e/v6e.
        vmem_limit = min(max(int(est * 1.2) + (2 << 20), 32 << 20), 48 << 20)

    out = pl.pallas_call(
        _matmul_kernel,
        out_shape=jax.ShapeDtypeStruct((M, N), out_dtype),
        grid_spec=pltpu.PrefetchScalarGridSpec(
            num_scalar_prefetch=0,
            grid=(grid_m, grid_n, grid_k),
            in_specs=[
                pl.BlockSpec((tm_e, tk_e), lambda i, j, k: (i, k)),  # x tile
                pl.BlockSpec((tk_e, tn_e), lambda i, j, k: (k, j)),  # weight tile
            ],
            out_specs=pl.BlockSpec((tm_e, tn_e), lambda i, j, k: (i, j)),
            scratch_shapes=[pltpu.VMEM((tm_e, tn_e), jnp.float32)],
        ),
        compiler_params=pltpu.CompilerParams(
            dimension_semantics=("parallel", "parallel", "arbitrary"),
            vmem_limit_bytes=vmem_limit,
        ),
    )(x2, weight)

    return out.reshape(*lead, N)


if __name__ == "__main__":
    key = jax.random.PRNGKey(0)
    kw, kx, kw2, kx2, kw3, kx3 = jax.random.split(key, 6)

    # --- 1) Small demo matching the module's intent (batch=2, seq=8, 32->64),
    #        f32 path: exact semantics of the reference module. ---------------
    input_dim, output_dim = 32, 64
    batch, seq = 2, 8
    weight = jax.random.normal(kw, (input_dim, output_dim), jnp.float32) / jnp.sqrt(
        jnp.float32(input_dim)
    )
    x = jax.random.normal(kx, (batch, seq, input_dim), dtype=jnp.float32)

    out = linear(x, weight)
    jax.block_until_ready(out)
    ref = x @ weight
    assert out.shape == (batch, seq, output_dim)
    assert jnp.allclose(out, ref, atol=1e-5, rtol=1e-5)

    # --- 2) Non-tile-aligned shapes with small override tiles to exercise the
    #        partial M/N edge blocks, K zero-padding and the multi-k grid. ----
    in2, out2_dim = 600, 300
    b2, s2 = 4, 150  # M = 600
    weight2 = jax.random.normal(kw2, (in2, out2_dim), jnp.float32) / jnp.sqrt(
        jnp.float32(in2)
    )
    x2 = jax.random.normal(kx2, (b2, s2, in2), dtype=jnp.float32)

    out2 = linear(x2, weight2, tm=256, tn=128, tk=256)  # grid (3, 3, 3)
    jax.block_until_ready(out2)
    ref2 = x2 @ weight2
    assert out2.shape == (b2, s2, out2_dim)
    assert jnp.allclose(out2, ref2, atol=1e-3, rtol=1e-3)

    # --- 3) bf16 MXU operands with f32 accumulation (production-recommended);
    #        weight pre-cast once outside the hot path. -----------------------
    weight3_f32 = jax.random.normal(kw3, (input_dim, output_dim), jnp.float32) / jnp.sqrt(
        jnp.float32(input_dim)
    )
    weight3 = weight3_f32.astype(jnp.bfloat16)  # cast hoisted out of the call
    x3 = jax.random.normal(kx3, (batch, seq, input_dim), dtype=jnp.float32)

    out3 = linear(x3, weight3, compute_dtype=jnp.bfloat16)
    jax.block_until_ready(out3)
    ref3 = jnp.dot(
        x3.astype(jnp.bfloat16), weight3, preferred_element_type=jnp.float32
    )
    assert out3.shape == (batch, seq, output_dim)
    assert jnp.allclose(out3, ref3, atol=1e-2, rtol=1e-2)

    print("KERNEL_OK")
</pallas_src>

<mosaic_0001>
module attributes {stable_mosaic.version = 11 : i64} {
  func.func @_matmul_kernel(%arg0: i32, %arg1: i32, %arg2: i32, %arg3: memref<16x32xf32, #tpu.memory_space<vmem>>, %arg4: memref<32x128xf32, #tpu.memory_space<vmem>>, %arg5: memref<16x128xf32, #tpu.memory_space<vmem>>, %arg6: memref<16x128xf32, #tpu.memory_space<vmem>>) attributes {dimension_semantics = [#tpu.dimension_semantics<parallel>, #tpu.dimension_semantics<parallel>, #tpu.dimension_semantics<arbitrary>], iteration_bounds = array<i64: 1, 1, 1>, scalar_prefetch = 0 : i64, scratch_operands = 1 : i64, tpu.core_type = #tpu.core_type<tc>, window_params = [{transform_indices = @transform_0, window_bounds = array<i64: 16, 32>}, {transform_indices = @transform_1, window_bounds = array<i64: 32, 128>}, {transform_indices = @transform_2, window_bounds = array<i64: 16, 128>}]} {
    %c0_i32 = arith.constant 0 : i32
    %0 = arith.cmpi eq, %arg2, %c0_i32 : i32
    %1 = arith.extui %0 : i1 to i32
    %c0_i32_0 = arith.constant 0 : i32
    %2 = arith.cmpi ne, %1, %c0_i32_0 : i32
    scf.if %2 {
      %cst_10 = arith.constant 0.000000e+00 : f32
      %12 = vector.broadcast %cst_10 : f32 to vector<16x128xf32>
      %c0_11 = arith.constant 0 : index
      %c0_12 = arith.constant 0 : index
      %13 = vector.load %arg6[%c0_11, %c0_12] : memref<16x128xf32, #tpu.memory_space<vmem>>, vector<16x128xf32>
      tpu.vector_store %arg6[%c0_11, %c0_12], %12 {strides = array<i32>} : memref<16x128xf32, #tpu.memory_space<vmem>>, vector<16x128xf32>,
    } else {
    }
    %c0 = arith.constant 0 : index
    %c0_1 = arith.constant 0 : index
    %3 = vector.load %arg6[%c0, %c0_1] : memref<16x128xf32, #tpu.memory_space<vmem>>, vector<16x128xf32>
    %c0_2 = arith.constant 0 : index
    %c0_3 = arith.constant 0 : index
    %4 = vector.load %arg3[%c0_2, %c0_3] : memref<16x32xf32, #tpu.memory_space<vmem>>, vector<16x32xf32>
    %c0_4 = arith.constant 0 : index
    %c0_5 = arith.constant 0 : index
    %5 = vector.load %arg4[%c0_4, %c0_5] : memref<32x128xf32, #tpu.memory_space<vmem>>, vector<32x128xf32>
    %cst = arith.constant dense<0.000000e+00> : vector<16x128xf32>
    %6 = tpu.matmul %4, %5, %cst {dimension_numbers = #tpu.dot_dimension_numbers<[1], [0], [0], [1], [0, 0, 1, 1], [], []>} : vector<16x32xf32>, vector<32x128xf32>, vector<16x128xf32> -> vector<16x128xf32>
    %7 = arith.addf %3, %6 : vector<16x128xf32>
    %c0_6 = arith.constant 0 : index
    %c0_7 = arith.constant 0 : index
    %8 = vector.load %arg6[%c0_6, %c0_7] : memref<16x128xf32, #tpu.memory_space<vmem>>, vector<16x128xf32>
    tpu.vector_store %arg6[%c0_6, %c0_7], %7 {strides = array<i32>} : memref<16x128xf32, #tpu.memory_space<vmem>>, vector<16x128xf32>,
    %c0_i32_8 = arith.constant 0 : i32
    %9 = arith.cmpi eq, %arg2, %c0_i32_8 : i32
    %10 = arith.extui %9 : i1 to i32
    %c0_i32_9 = arith.constant 0 : i32
    %11 = arith.cmpi ne, %10, %c0_i32_9 : i32
    scf.if %11 {
      %c0_10 = arith.constant 0 : index
      %c0_11 = arith.constant 0 : index
      %12 = vector.load %arg6[%c0_10, %c0_11] : memref<16x128xf32, #tpu.memory_space<vmem>>, vector<16x128xf32>
      %c0_12 = arith.constant 0 : index
      %c0_13 = arith.constant 0 : index
      %13 = vector.load %arg5[%c0_12, %c0_13] : memref<16x128xf32, #tpu.memory_space<vmem>>, vector<16x128xf32>
      tpu.vector_store %arg5[%c0_12, %c0_13], %12 {strides = array<i32>} : memref<16x128xf32, #tpu.memory_space<vmem>>, vector<16x128xf32>,
    } else {
    }
    return
  }
  func.func @transform_0(%arg0: i32, %arg1: i32, %arg2: i32) -> (i32, i32) {
    %c0_i32 = arith.constant 0 : i32
    return %arg0, %arg2 : i32, i32
  }
  func.func @transform_1(%arg0: i32, %arg1: i32, %arg2: i32) -> (i32, i32) {
    %c0_i32 = arith.constant 0 : i32
    return %arg2, %arg1 : i32, i32
  }
  func.func @transform_2(%arg0: i32, %arg1: i32, %arg2: i32) -> (i32, i32) {
    %c0_i32 = arith.constant 0 : i32
    return %arg0, %arg1 : i32, i32
  }
}

</mosaic_0001>

<llo_original>
// kernel: tpu_custom_call.1
$region0: #{tpu_custom_call.1}
  #allocation0 [shape = 'u32[]', space=smem, size = 0x4, offset = 0x4, fixed_abs, tag = 'smem constant byte address 0x4 - core index']
  #allocation1 [shape = 'u32[144,128]{1,0:T(1,128)}', space=vmem, size = 0x12000, scoped, tag = 'internal scratch']
  #allocation2 [shape = 'f32[16,128]{1,0:T(8,128)}', space=vmem, size = 0x2000, scoped, tag = 'scratch operand']
  %s0 = inlined_call_operand.hbm [shape: f32[16,32], index: 0, kind: input, shape index: {}]
  %s1 = inlined_call_operand.hbm [shape: f32[32,64], index: 1, kind: input, shape index: {}]
  %s2 = inlined_call_operand.hbm [shape: f32[16,64], index: 2, kind: output, shape index: {}]
  %s3 = sld [smem:[#allocation0]]
  $region34: #{tpu_custom_call.1} parent=0
    _
  %s5 = ssub.s32 1, %s3
  %s6 = scalar_select 0, %s5, %s3
  $region1: #{tpu_custom_call.1} parent=0
    #allocation3 [shape = 'u8[8192]{0}', space=vmem, size = 0x2000, scoped, tag = 'input window, operand 0, single buffered']
    #allocation4 [shape = 's32[1]{0}', space=sflag, size = 0x4, scoped, tag = 'scoped memory for tpu_custom_call.1']
    #allocation5 [shape = 's32[1]{0}', space=sflag, size = 0x4, scoped, tag = 'scoped memory for tpu_custom_call.1']
    #allocation6 [shape = 'u8[16384]{0}', space=vmem, size = 0x4000, scoped, tag = 'input window, operand 1, single buffered']
    #allocation7 [shape = 's32[1]{0}', space=sflag, size = 0x4, scoped, tag = 'scoped memory for tpu_custom_call.1']
    #allocation8 [shape = 'u8[8192]{0}', space=vmem, size = 0x2000, scoped, tag = 'output window, operand 0, single buffered']
    %7 = vsyncpa [#allocation4], 0
    %8 = vsyncpa [#allocation7], 0
    %9 = vsyncpa [#allocation5], 0
    // Predicated region
    $region2: #{tpu_custom_call.1} parent=1 // pred_check
      _
    $region3: #{tpu_custom_call.1} parent=1 // pred_check_branch
      %11 = sbr.rel (0) target = $region5
    $region4: #{tpu_custom_call.1} parent=1 // pred_region
      %s13 = ssub.s32 256, 256
      %14 = vsyncadd [#allocation4], %s13
      %s15 = sshll.u32 [#allocation3], 4
      %s16 = int_to_ptr.vmem [resolvable:$true] %s15
      %21 = dma.hbm_to_vmem [thread:$0]  %s0, 256, %s16, [#allocation4], 128, 128, 8
    $region5: #{tpu_custom_call.1} parent=1 // pred_fallthru
      _
    // Predicated region
    $region6: #{tpu_custom_call.1} parent=1 // pred_check
      _
    $region7: #{tpu_custom_call.1} parent=1 // pred_check_branch
      %23 = sbr.rel (0) target = $region9
    $region8: #{tpu_custom_call.1} parent=1 // pred_region
      %s25 = ssub.s32 512, 512
      %26 = vsyncadd [#allocation7], %s25
      %s27 = sshll.u32 [#allocation6], 4
      %s28 = int_to_ptr.vmem [resolvable:$true] %s27
      %33 = dma.hbm_to_vmem [thread:$0]  %s1, 512, %s28, [#allocation7], 128, 128, 8
    $region9: #{tpu_custom_call.1} parent=1 // pred_fallthru
      _
    // Predicated region
    $region10: #{tpu_custom_call.1} parent=1 // pred_check
      _
    $region11: #{tpu_custom_call.1} parent=1 // pred_check_branch
      %35 = sbr.rel (0) target = $region13
    $region12: #{tpu_custom_call.1} parent=1 // pred_region
      %36 = dma.done [#allocation4], 256
    $region13: #{tpu_custom_call.1} parent=1 // pred_fallthru
      _
    // Predicated region
    $region14: #{tpu_custom_call.1} parent=1 // pred_check
      _
    $region15: #{tpu_custom_call.1} parent=1 // pred_check_branch
      %38 = sbr.rel (0) target = $region17
    $region16: #{tpu_custom_call.1} parent=1 // pred_region
      %39 = dma.done [#allocation7], 512
    $region17: #{tpu_custom_call.1} parent=1 // pred_fallthru
      _
    %p40 = scmp.eq.s32.totalorder 0, 0
    // Predicated region
    $region18: #{tpu_custom_call.1} parent=1 // pred_check
      %p41 = pneg %p40
    $region19: #{tpu_custom_call.1} parent=1 // pred_check_branch
      %43 = sbr.rel (%p41) target = $region21
    $region20: #{tpu_custom_call.1} parent=1 // pred_region
      %44 = vst [vmem:[#allocation2] sm:$0xff] 0.0
      %45 = vst [vmem:[#allocation2 + $0x8] sm:$0xff] 0.0
    $region21: #{tpu_custom_call.1} parent=1 // pred_fallthru
      _
    %v46 = vld [vmem:[#allocation2] sm:$0xff]
    %v47 = vld [vmem:[#allocation2 + $0x8] sm:$0xff]
    %v48 = vld [vmem:[#allocation3] sm:$0xff]
    %v49 = vld [vmem:[#allocation3 + $0x8] sm:$0xff]
    %v50 = vld [vmem:[#allocation6] sm:$0xff]
    %v51 = vld [vmem:[#allocation6 + $0x8] sm:$0xff]
    %v52 = vld [vmem:[#allocation6 + $0x10] sm:$0xff]
    %v53 = vld [vmem:[#allocation6 + $0x18] sm:$0xff]
    %vm54 = vcmask 261120
    %v56 = vsel %vm54, %v48, 0
    %v59 = vsel %vm54, %v49, 0
    %61 = vmatprep.subr.mxu0 0.0
    %62 = vmatpush1.msra.mxu0 %v50
    %63 = vmatprep.subr.mxu0 0.0
    %64 = vmatpush1.msra.mxu0 %v51
    %65 = vmatprep.subr.mxu0 0.0
    %66 = vmatpush1.msra.mxu0 %v52
    %67 = vmatprep.subr.mxu0 0.0
    %68 = vmatpush1.msra.mxu0 %v53
    %69 = vmatprep.subr.mxu0 0.0
    %70 = vmatpush1.msra.mxu0 0.0
    %71 = vmatprep.subr.mxu0 0.0
    %72 = vmatpush1.msra.mxu0 0.0
    %73 = vmatprep.subr.mxu0 0.0
    %74 = vmatpush1.msra.mxu0 0.0
    %75 = vmatprep.subr.mxu0 0.0
    %76 = vmatpush1.msra.mxu0 0.0
    %77 = vmatprep.subr.mxu0 0.0
    %78 = vmatpush1.msra.mxu0 0.0
    %79 = vmatprep.subr.mxu0 0.0
    %80 = vmatpush1.msra.mxu0 0.0
    %81 = vmatprep.subr.mxu0 0.0
    %82 = vmatpush1.msra.mxu0 0.0
    %83 = vmatprep.subr.mxu0 0.0
    %84 = vmatpush1.msra.mxu0 0.0
    %85 = vmatprep.subr.mxu0 0.0
    %86 = vmatpush1.msra.mxu0 0.0
    %87 = vmatprep.subr.mxu0 0.0
    %88 = vmatpush1.msra.mxu0 0.0
    %89 = vmatprep.subr.mxu0 0.0
    %90 = vmatpush1.msra.mxu0 0.0
    %91 = vmatprep.subr.mxu0 0.0
    %92 = vmatpush1.msra.mxu0 0.0
    %93 = vmatprep.subr.mxu0 0.0
    %94 = vmatpush1.msra.mxu0 0.0
    %95 = vmatprep.subr.mxu0 0.0
    %96 = vmatpush1.msra.mxu0 0.0
    %97 = vmatprep.subr.mxu0 0.0
    %98 = vmatpush1.msra.mxu0 0.0
    %99 = vmatprep.subr.mxu0 0.0
    %100 = vmatpush1.msra.mxu0 0.0
    %101 = vmatprep.subr.mxu0 0.0
    %102 = vmatpush1.msra.mxu0 0.0
    %103 = vmatprep.subr.mxu0 0.0
    %104 = vmatpush1.msra.mxu0 0.0
    %105 = vmatprep.subr.mxu0 0.0
    %106 = vmatpush1.msra.mxu0 0.0
    %107 = vmatprep.subr.mxu0 0.0
    %108 = vmatpush1.msra.mxu0 0.0
    %109 = vmatprep.subr.mxu0 0.0
    %110 = vmatpush1.msra.mxu0 0.0
    %111 = vmatprep.subr.mxu0 0.0
    %112 = vmatpush1.msra.mxu0 0.0
    %113 = vmatprep.subr.mxu0 0.0
    %114 = vmatpush1.msra.mxu0 0.0
    %115 = vmatprep.subr.mxu0 0.0
    %116 = vmatpush1.msra.mxu0 0.0
    %117 = vmatprep.subr.mxu0 0.0
    %118 = vmatpush1.msra.mxu0 0.0
    %119 = vmatprep.subr.mxu0 0.0
    %120 = vmatpush1.msra.mxu0 0.0
    %121 = vmatprep.subr.mxu0 0.0
    %122 = vmatpush1.msra.mxu0 0.0
    %123 = vmatprep.subr.mxu0 0.0
    %124 = vmatpush1.msra.mxu0 0.0
    %125 = vmatprep.mubr.f32.mxu0 0.0
    %126 = vmatmul.mubr.f32.gmra.mrb[0].mxu0 %v56
    %v127 = vpop.f32.mrb[0].mxu0
    %v128 = vadd.f32 0.0, %v127
    %v129 = vpop.f32.mrb[0].mxu0
    %130 = vmatprep.mubr.f32.mxu0 0.0
    %131 = vmatmul.mubr.f32.gmra.mrb[0].mxu0 %v59
    %v132 = vpop.f32.mrb[0].mxu0
    %v133 = vadd.f32 0.0, %v132
    %v134 = vpop.f32.mrb[0].mxu0
    %135 = vdwg.mxu0
    %v136 = vadd.f32 %v46, %v128
    %v137 = vadd.f32 %v47, %v133
    %138 = vst [vmem:[#allocation2] sm:$0xff] %v136
    %139 = vst [vmem:[#allocation2 + $0x8] sm:$0xff] %v137
    // Predicated region
    $region22: #{tpu_custom_call.1} parent=1 // pred_check
      %p140 = pneg %p40
    $region23: #{tpu_custom_call.1} parent=1 // pred_check_branch
      %142 = sbr.rel (%p140) target = $region25
    $region24: #{tpu_custom_call.1} parent=1 // pred_region
      %v143 = vld [vmem:[#allocation2] sm:$0xff]
      %v144 = vld [vmem:[#allocation2 + $0x8] sm:$0xff]
      %145 = vst [vmem:[#allocation8] sm:$0xff] %v143
      %146 = vst [vmem:[#allocation8 + $0x8] sm:$0xff] %v144
    $region25: #{tpu_custom_call.1} parent=1 // pred_fallthru
      _
    // Predicated region
    $region26: #{tpu_custom_call.1} parent=1 // pred_check
      _
    $region27: #{tpu_custom_call.1} parent=1 // pred_check_branch
      %148 = sbr.rel (0) target = $region29
    $region28: #{tpu_custom_call.1} parent=1 // pred_region
      %s150 = ssub.s32 256, 256
      %151 = vsyncadd [#allocation5], %s150
      %s152 = sshll.u32 [#allocation8], 4
      %s153 = int_to_ptr.vmem [resolvable:$true] %s152
      %158 = dma.vmem_to_hbm [thread:$0]  %s153, 256, %s2, [#allocation5], 128, 128, 8
    $region29: #{tpu_custom_call.1} parent=1 // pred_fallthru
      _
    // Predicated region
    $region30: #{tpu_custom_call.1} parent=1 // pred_check
      _
    $region31: #{tpu_custom_call.1} parent=1 // pred_check_branch
      %160 = sbr.rel (0) target = $region33
    $region32: #{tpu_custom_call.1} parent=1 // pred_region
      %161 = dma.done [#allocation5], 256
    $region33: #{tpu_custom_call.1} parent=1 // pred_fallthru
      _
    %162 = vsyncpa [#allocation4], 1
    %163 = vsyncpa [#allocation7], 1
    %164 = vsyncpa [#allocation5], 1

</llo_original>
